<compile_context>
chip_gen: v6e
topology: v6e:2x2x1
jax: 0.10.0
libtpu: 0.0.40
codegen_flags: <defaults>
</compile_context>

<pallas_src>
import functools

import numpy as np
import jax
import jax.numpy as jnp
from jax.experimental import pallas as pl
from jax.experimental.pallas import tpu as pltpu

LANE = 128


def _round_up(x: int, m: int) -> int:
    return (x + m - 1) // m * m


def _block_spec(shape, index_map, buffer_count=None):
    """BlockSpec with optional pipeline_mode; falls back if kwarg unsupported."""
    if buffer_count is not None:
        try:
            return pl.BlockSpec(shape, index_map,
                                pipeline_mode=pl.Buffered(buffer_count))
        except Exception:
            pass
    return pl.BlockSpec(shape, index_map)


def _vmem_budget_bytes() -> int:
    """~85% of per-core VMEM capacity; 64 MiB (v7x-safe) if the query fails."""
    try:
        cap = int(pltpu.get_tpu_info().vmem_capacity_bytes)
    except Exception:
        cap = 64 * 1024 * 1024
    return max(32 * 1024 * 1024, int(cap * 0.85))


def _pick_epilogue_dtype(compute_dtype):
    """bf16 tanh/bias epilogue on bf16-capable VPU/EUP (v6e/v7x), f32 otherwise."""
    if np.dtype(compute_dtype).itemsize == 4:
        return jnp.float32
    try:
        kind = jax.devices()[0].device_kind.lower()
    except Exception:
        kind = ""
    if ("v6" in kind) or ("v7" in kind):
        return compute_dtype
    return jnp.float32


def _pick_feature_tile(dim: int, target: int = 512) -> int:
    """Largest of {target,256,128} that divides dim (dim is a multiple of 128)."""
    for t in (target, 256, 128):
        if t <= dim and dim % t == 0:
            return t
    return dim


# --------------------------------------------------------------------------
# Fused whole-MLP kernel: all layers on one batch tile, activations on-chip.
# --------------------------------------------------------------------------
def _fused_mlp_kernel(*refs, num_layers: int, compute_dtype, epilogue_dtype):
    """refs = (x_ref, w0, b0, ..., w_{L-1}, b_{L-1}, o_ref).

    x_ref : (TB, D0p)         compute_dtype
    w_l   : (D_lp, D_{l+1}p)  compute_dtype, VMEM-resident (Buffered(1))
    b_l   : (1,    D_{l+1}p)  float32
    o_ref : (TB, DLp)         out dtype
    """
    x_ref = refs[0]
    o_ref = refs[1 + 2 * num_layers]

    h = x_ref[...]
    acc = None
    for l in range(num_layers):
        w_ref = refs[1 + 2 * l]
        b_ref = refs[2 + 2 * l]
        acc = jnp.dot(h, w_ref[...], preferred_element_type=jnp.float32)
        acc = acc + b_ref[...]                       # f32 bias broadcast
        if l < num_layers - 1:
            # epilogue_dtype is f32 on v5e/older, bf16 on v6e/v7x.
            h = jnp.tanh(acc.astype(epilogue_dtype)).astype(compute_dtype)
    o_ref[...] = acc.astype(o_ref.dtype)


# --------------------------------------------------------------------------
# Fallback: per-layer K/N-tiled matmul (+bias, +tanh) when weights don't fit.
# --------------------------------------------------------------------------
def _layer_kernel(x_ref, w_ref, b_ref, o_ref, acc_ref, *, apply_act, epilogue_dtype):
    k = pl.program_id(2)

    @pl.when(k == 0)
    def _():
        acc_ref[...] = jnp.zeros_like(acc_ref)

    acc_ref[...] += jnp.dot(x_ref[...], w_ref[...],
                            preferred_element_type=jnp.float32)

    @pl.when(k == pl.num_programs(2) - 1)
    def _():
        r = acc_ref[...] + b_ref[...]
        if apply_act:
            r = jnp.tanh(r.astype(epilogue_dtype))
        o_ref[...] = r.astype(o_ref.dtype)


def _layer_matmul(xp, wp, bp, *, out_dtype, apply_act, epilogue_dtype, tb, vmem_limit):
    Bp, K = xp.shape
    N = wp.shape[1]
    tk = _pick_feature_tile(K)
    tn = _pick_feature_tile(N)
    kernel = functools.partial(_layer_kernel, apply_act=apply_act,
                               epilogue_dtype=epilogue_dtype)
    return pl.pallas_call(
        kernel,
        out_shape=jax.ShapeDtypeStruct((Bp, N), out_dtype),
        grid=(Bp // tb, N // tn, K // tk),
        in_specs=[pl.BlockSpec((tb, tk), lambda i, j, k: (i, k)),
                  pl.BlockSpec((tk, tn), lambda i, j, k: (k, j)),
                  pl.BlockSpec((1, tn), lambda i, j, k: (0, j))],
        out_specs=pl.BlockSpec((tb, tn), lambda i, j, k: (i, j)),
        scratch_shapes=[pltpu.VMEM((tb, tn), jnp.float32)],
        compiler_params=pltpu.CompilerParams(
            dimension_semantics=("parallel", "parallel", "arbitrary"),
            vmem_limit_bytes=vmem_limit,
        ),
    )(xp, wp, bp)


def _layerwise_forward(xp, packed_params, *, tb, out_dtype, compute_dtype,
                       epilogue_dtype, vmem_limit):
    num_layers = len(packed_params)
    h = xp
    for l, (wp, bp) in enumerate(packed_params):
        last = (l == num_layers - 1)
        h = _layer_matmul(h, wp, bp,
                          out_dtype=(out_dtype if last else compute_dtype),
                          apply_act=not last,
                          epilogue_dtype=epilogue_dtype,
                          tb=tb, vmem_limit=vmem_limit)
    return h


# --------------------------------------------------------------------------
# Parameter packing (done once, outside the per-call path).
# --------------------------------------------------------------------------
def pack_mlp_params(params, compute_dtype=jnp.bfloat16):
    """Zero-pad every feature dim to a multiple of 128 and cast weights to the
    MXU compute dtype. Zero padding is exact for Linear(+bias)+Tanh."""
    dims = [params[0][0].shape[0]] + [w.shape[1] for w, _ in params]
    dims_p = [_round_up(d, LANE) for d in dims]
    packed = []
    for l, (w, b) in enumerate(params):
        din, dout = w.shape
        wp = jnp.zeros((dims_p[l], dims_p[l + 1]), compute_dtype)
        wp = wp.at[:din, :dout].set(w.astype(compute_dtype))
        bp = jnp.zeros((1, dims_p[l + 1]), jnp.float32)
        bp = bp.at[0, :dout].set(b.astype(jnp.float32))
        packed.append((wp, bp))
    return packed


# --------------------------------------------------------------------------
# Forward pass.
# --------------------------------------------------------------------------
@functools.partial(jax.jit,
                   static_argnames=("out_features", "batch_tile",
                                    "compute_dtype", "out_dtype",
                                    "force_layerwise"))
def mlp_forward(packed_params, x, *, out_features, batch_tile=512,
                compute_dtype=jnp.bfloat16, out_dtype=None,
                force_layerwise=False):
    """packed_params: output of pack_mlp_params; x: (B, D0).

    NOTE: compute_dtype=bfloat16 matches torch f32 only to bf16 matmul
    precision (f32 MXU accumulation); pass jnp.float32 for full parity.
    """
    num_layers = len(packed_params)
    B, D0 = x.shape
    if out_dtype is None:
        out_dtype = x.dtype

    dims_p = [packed_params[0][0].shape[0]] + [wp.shape[1] for wp, _ in packed_params]

    cdt_size = np.dtype(compute_dtype).itemsize
    sub = max(8, 32 // cdt_size)           # sublane packing (8 f32 / 16 bf16)

    # Batch tile: multiple of sublane packing; split into >=2 grid steps when
    # the batch allows so the "parallel" axis can shard across v7x's two TCs.
    tb = min(batch_tile, _round_up(B, sub))
    tb = max(sub, _round_up(tb, sub))
    if B > sub and pl.cdiv(_round_up(B, sub), tb) < 2:
        tb = max(sub, _round_up(pl.cdiv(B, 2), sub))
    b_pad = _round_up(B, tb)

    # Pad + cast the activations (only per-call data movement besides weights).
    xp = jnp.zeros((b_pad, dims_p[0]), compute_dtype)
    xp = xp.at[:B, :D0].set(x.astype(compute_dtype))

    epilogue_dtype = _pick_epilogue_dtype(compute_dtype)
    budget = _vmem_budget_bytes()

    # Fused-path VMEM footprint: single-buffered weights/biases + double-
    # buffered x/out tiles + activation working set.
    weight_bytes = sum(int(wp.size) * wp.dtype.itemsize +
                       int(bp.size) * bp.dtype.itemsize
                       for wp, bp in packed_params)
    tile_bytes = (2 * tb * dims_p[0] * cdt_size +
                  2 * tb * dims_p[-1] * np.dtype(out_dtype).itemsize)
    act_bytes = 2 * tb * max(dims_p) * 4
    footprint = weight_bytes + tile_bytes + act_bytes + (4 << 20)

    if force_layerwise or footprint > budget:
        # Weights too large to keep resident (e.g. big hidden dims on v7x's
        # 64 MiB VMEM): K/N-tiled per-layer kernels instead.
        out_p = _layerwise_forward(xp, packed_params, tb=tb,
                                   out_dtype=out_dtype,
                                   compute_dtype=compute_dtype,
                                   epilogue_dtype=epilogue_dtype,
                                   vmem_limit=budget)
        return out_p[:B, :out_features]

    flat_args = [xp]
    in_specs = [pl.BlockSpec((tb, dims_p[0]), lambda i: (i, 0))]
    for l, (wp, bp) in enumerate(packed_params):
        flat_args += [wp, bp]
        # Constant index_map + single buffering: weights/biases stay resident
        # across batch steps at 1x their size in VMEM.
        in_specs += [
            _block_spec((dims_p[l], dims_p[l + 1]), lambda i: (0, 0), buffer_count=1),
            _block_spec((1, dims_p[l + 1]), lambda i: (0, 0), buffer_count=1),
        ]
    out_specs = pl.BlockSpec((tb, dims_p[-1]), lambda i: (i, 0))

    vmem_limit = min(budget, max(footprint + (8 << 20), 32 * 1024 * 1024))

    kernel = functools.partial(_fused_mlp_kernel, num_layers=num_layers,
                               compute_dtype=compute_dtype,
                               epilogue_dtype=epilogue_dtype)
    out_p = pl.pallas_call(
        kernel,
        out_shape=jax.ShapeDtypeStruct((b_pad, dims_p[-1]), out_dtype),
        grid=(b_pad // tb,),
        in_specs=in_specs,
        out_specs=out_specs,
        compiler_params=pltpu.CompilerParams(
            dimension_semantics=("parallel",),
            vmem_limit_bytes=vmem_limit,
        ),
    )(*flat_args)
    return out_p[:B, :out_features]


# --------------------------------------------------------------------------
# Init + pure-JAX reference (mirrors torch nn.Linear / nn.Tanh semantics).
# --------------------------------------------------------------------------
def init_mlp_params(key, sizes, dtype=jnp.float32):
    """nn.Linear-compatible init; weight stored (in_features, out_features)."""
    params = []
    for i in range(len(sizes) - 1):
        fan_in, fan_out = sizes[i], sizes[i + 1]
        key, kw, kb = jax.random.split(key, 3)
        bound = 1.0 / (fan_in ** 0.5)
        w = jax.random.uniform(kw, (fan_in, fan_out), dtype, -bound, bound)
        b = jax.random.uniform(kb, (fan_out,), dtype, -bound, bound)
        params.append((w, b))
    return params


def mlp_reference(params, x, *, compute_dtype=jnp.float32):
    n = len(params)
    h = x
    for i, (w, b) in enumerate(params):
        acc = jnp.dot(h.astype(compute_dtype), w.astype(compute_dtype),
                      preferred_element_type=jnp.float32)
        acc = acc + b.astype(jnp.float32)
        if i < n - 1:
            acc = jnp.tanh(acc)
        h = acc
    return h.astype(x.dtype)


if __name__ == "__main__":
    sizes = (32, 64, 48, 16)   # MLP(sizes): 3 Linear layers, Tanh between them
    batch = 8

    key = jax.random.PRNGKey(0)
    key, kx = jax.random.split(key)
    x = jax.random.normal(kx, (batch, sizes[0]), jnp.float32)
    params = init_mlp_params(key, sizes)

    # Pad/cast parameters once (hoisted out of the per-call path).
    packed = pack_mlp_params(params, compute_dtype=jnp.bfloat16)

    out = jax.block_until_ready(mlp_forward(packed, x, out_features=sizes[-1]))

    ref_bf16 = mlp_reference(params, x, compute_dtype=jnp.bfloat16)
    ref_f32 = mlp_reference(params, x, compute_dtype=jnp.float32)
    assert out.shape == (batch, sizes[-1]), out.shape
    assert jnp.allclose(out, ref_bf16, atol=2e-2, rtol=2e-2), \
        "mismatch vs bf16-matmul reference"
    assert jnp.allclose(out, ref_f32, atol=5e-2, rtol=5e-2), \
        "mismatch vs f32 reference"

    # Also exercise the >=2-step batch grid (megacore path) and the
    # layer-tiled fallback used when weights would not fit in VMEM.
    x2 = jax.random.normal(jax.random.PRNGKey(1), (40, sizes[0]), jnp.float32)
    out2 = jax.block_until_ready(mlp_forward(packed, x2, out_features=sizes[-1]))
    out2_lw = jax.block_until_ready(
        mlp_forward(packed, x2, out_features=sizes[-1], force_layerwise=True))
    ref2 = mlp_reference(params, x2, compute_dtype=jnp.float32)
    assert out2.shape == (40, sizes[-1]), out2.shape
    assert jnp.allclose(out2, ref2, atol=5e-2, rtol=5e-2), "fused multi-tile mismatch"
    assert jnp.allclose(out2_lw, ref2, atol=5e-2, rtol=5e-2), "layerwise fallback mismatch"

    print("KERNEL_OK")
</pallas_src>

<mosaic_0001>
module attributes {stable_mosaic.version = 11 : i64} {
  func.func @_fused_mlp_kernel(%arg0: i32, %arg1: memref<16x128xbf16, #tpu.memory_space<vmem>>, %arg2: memref<128x128xbf16, #tpu.memory_space<vmem>>, %arg3: memref<1x128xf32, #tpu.memory_space<vmem>>, %arg4: memref<128x128xbf16, #tpu.memory_space<vmem>>, %arg5: memref<1x128xf32, #tpu.memory_space<vmem>>, %arg6: memref<128x128xbf16, #tpu.memory_space<vmem>>, %arg7: memref<1x128xf32, #tpu.memory_space<vmem>>, %arg8: memref<16x128xf32, #tpu.memory_space<vmem>>) attributes {dimension_semantics = [#tpu.dimension_semantics<parallel>], iteration_bounds = array<i64: 1>, scalar_prefetch = 0 : i64, scratch_operands = 0 : i64, tpu.core_type = #tpu.core_type<tc>, window_params = [{transform_indices = @transform_0, window_bounds = array<i64: 16, 128>}, {pipeline_mode = #tpu.pipeline_mode<synchronous>, transform_indices = @transform_1, window_bounds = array<i64: 128, 128>}, {pipeline_mode = #tpu.pipeline_mode<synchronous>, transform_indices = @transform_2, window_bounds = array<i64: 1, 128>}, {pipeline_mode = #tpu.pipeline_mode<synchronous>, transform_indices = @transform_3, window_bounds = array<i64: 128, 128>}, {pipeline_mode = #tpu.pipeline_mode<synchronous>, transform_indices = @transform_4, window_bounds = array<i64: 1, 128>}, {pipeline_mode = #tpu.pipeline_mode<synchronous>, transform_indices = @transform_5, window_bounds = array<i64: 128, 128>}, {pipeline_mode = #tpu.pipeline_mode<synchronous>, transform_indices = @transform_6, window_bounds = array<i64: 1, 128>}, {transform_indices = @transform_7, window_bounds = array<i64: 16, 128>}]} {
    %c0 = arith.constant 0 : index
    %c0_0 = arith.constant 0 : index
    %0 = vector.load %arg1[%c0, %c0_0] : memref<16x128xbf16, #tpu.memory_space<vmem>>, vector<16x128xbf16>
    %c0_1 = arith.constant 0 : index
    %c0_2 = arith.constant 0 : index
    %1 = vector.load %arg2[%c0_1, %c0_2] : memref<128x128xbf16, #tpu.memory_space<vmem>>, vector<128x128xbf16>
    %cst = arith.constant dense<0.000000e+00> : vector<16x128xf32>
    %2 = tpu.matmul %0, %1, %cst {dimension_numbers = #tpu.dot_dimension_numbers<[1], [0], [0], [1], [0, 0, 1, 1], [], []>} : vector<16x128xbf16>, vector<128x128xbf16>, vector<16x128xf32> -> vector<16x128xf32>
    %c0_3 = arith.constant 0 : index
    %c0_4 = arith.constant 0 : index
    %3 = vector.load %arg3[%c0_3, %c0_4] : memref<1x128xf32, #tpu.memory_space<vmem>>, vector<1x128xf32>
    %4 = vector.broadcast %3 : vector<1x128xf32> to vector<16x128xf32>
    %5 = arith.addf %2, %4 : vector<16x128xf32>
    %6 = math.tanh %5 : vector<16x128xf32>
    %7 = arith.truncf %6 : vector<16x128xf32> to vector<16x128xbf16>
    %c0_5 = arith.constant 0 : index
    %c0_6 = arith.constant 0 : index
    %8 = vector.load %arg4[%c0_5, %c0_6] : memref<128x128xbf16, #tpu.memory_space<vmem>>, vector<128x128xbf16>
    %cst_7 = arith.constant dense<0.000000e+00> : vector<16x128xf32>
    %9 = tpu.matmul %7, %8, %cst_7 {dimension_numbers = #tpu.dot_dimension_numbers<[1], [0], [0], [1], [0, 0, 1, 1], [], []>} : vector<16x128xbf16>, vector<128x128xbf16>, vector<16x128xf32> -> vector<16x128xf32>
    %c0_8 = arith.constant 0 : index
    %c0_9 = arith.constant 0 : index
    %10 = vector.load %arg5[%c0_8, %c0_9] : memref<1x128xf32, #tpu.memory_space<vmem>>, vector<1x128xf32>
    %11 = vector.broadcast %10 : vector<1x128xf32> to vector<16x128xf32>
    %12 = arith.addf %9, %11 : vector<16x128xf32>
    %13 = math.tanh %12 : vector<16x128xf32>
    %14 = arith.truncf %13 : vector<16x128xf32> to vector<16x128xbf16>
    %c0_10 = arith.constant 0 : index
    %c0_11 = arith.constant 0 : index
    %15 = vector.load %arg6[%c0_10, %c0_11] : memref<128x128xbf16, #tpu.memory_space<vmem>>, vector<128x128xbf16>
    %cst_12 = arith.constant dense<0.000000e+00> : vector<16x128xf32>
    %16 = tpu.matmul %14, %15, %cst_12 {dimension_numbers = #tpu.dot_dimension_numbers<[1], [0], [0], [1], [0, 0, 1, 1], [], []>} : vector<16x128xbf16>, vector<128x128xbf16>, vector<16x128xf32> -> vector<16x128xf32>
    %c0_13 = arith.constant 0 : index
    %c0_14 = arith.constant 0 : index
    %17 = vector.load %arg7[%c0_13, %c0_14] : memref<1x128xf32, #tpu.memory_space<vmem>>, vector<1x128xf32>
    %18 = vector.broadcast %17 : vector<1x128xf32> to vector<16x128xf32>
    %19 = arith.addf %16, %18 : vector<16x128xf32>
    %c0_15 = arith.constant 0 : index
    %c0_16 = arith.constant 0 : index
    %20 = vector.load %arg8[%c0_15, %c0_16] : memref<16x128xf32, #tpu.memory_space<vmem>>, vector<16x128xf32>
    tpu.vector_store %arg8[%c0_15, %c0_16], %19 {strides = array<i32>} : memref<16x128xf32, #tpu.memory_space<vmem>>, vector<16x128xf32>,
    return
  }
  func.func @transform_0(%arg0: i32) -> (i32, i32) {
    %c0_i32 = arith.constant 0 : i32
    %c0_i32_0 = arith.constant 0 : i32
    return %arg0, %c0_i32 : i32, i32
  }
  func.func @transform_1(%arg0: i32) -> (i32, i32) {
    %c0_i32 = arith.constant 0 : i32
    %c0_i32_0 = arith.constant 0 : i32
    %c0_i32_1 = arith.constant 0 : i32
    return %c0_i32, %c0_i32_0 : i32, i32
  }
  func.func @transform_2(%arg0: i32) -> (i32, i32) {
    %c0_i32 = arith.constant 0 : i32
    %c0_i32_0 = arith.constant 0 : i32
    %c0_i32_1 = arith.constant 0 : i32
    return %c0_i32, %c0_i32_0 : i32, i32
  }
  func.func @transform_3(%arg0: i32) -> (i32, i32) {
    %c0_i32 = arith.constant 0 : i32
    %c0_i32_0 = arith.constant 0 : i32
    %c0_i32_1 = arith.constant 0 : i32
    return %c0_i32, %c0_i32_0 : i32, i32
  }
  func.func @transform_4(%arg0: i32) -> (i32, i32) {
    %c0_i32 = arith.constant 0 : i32
    %c0_i32_0 = arith.constant 0 : i32
    %c0_i32_1 = arith.constant 0 : i32
    return %c0_i32, %c0_i32_0 : i32, i32
  }
  func.func @transform_5(%arg0: i32) -> (i32, i32) {
    %c0_i32 = arith.constant 0 : i32
    %c0_i32_0 = arith.constant 0 : i32
    %c0_i32_1 = arith.constant 0 : i32
    return %c0_i32, %c0_i32_0 : i32, i32
  }
  func.func @transform_6(%arg0: i32) -> (i32, i32) {
    %c0_i32 = arith.constant 0 : i32
    %c0_i32_0 = arith.constant 0 : i32
    %c0_i32_1 = arith.constant 0 : i32
    return %c0_i32, %c0_i32_0 : i32, i32
  }
  func.func @transform_7(%arg0: i32) -> (i32, i32) {
    %c0_i32 = arith.constant 0 : i32
    %c0_i32_0 = arith.constant 0 : i32
    return %arg0, %c0_i32 : i32, i32
  }
}

</mosaic_0001>

<llo_original>
// kernel: mlp_forward.1
$region0: #{mlp_forward.1}
  #allocation0 [shape = 'u32[]', space=smem, size = 0x4, offset = 0x4, fixed_abs, tag = 'smem constant byte address 0x4 - core index']
  #allocation1 [shape = 'u32[144,128]{1,0:T(1,128)}', space=vmem, size = 0x12000, scoped, tag = 'internal scratch']
  %s0 = inlined_call_operand.vmem [shape: bf16[16,128], index: 0, kind: input, shape index: {}]
  %s1 = inlined_call_operand.hbm [shape: bf16[128,128], index: 1, kind: input, shape index: {}]
  %s2 = inlined_call_operand.vmem [shape: f32[1,128], index: 2, kind: input, shape index: {}]
  %s3 = inlined_call_operand.hbm [shape: bf16[128,128], index: 3, kind: input, shape index: {}]
  %s4 = inlined_call_operand.vmem [shape: f32[1,128], index: 4, kind: input, shape index: {}]
  %s5 = inlined_call_operand.hbm [shape: bf16[128,128], index: 5, kind: input, shape index: {}]
  %s6 = inlined_call_operand.vmem [shape: f32[1,128], index: 6, kind: input, shape index: {}]
  %s7 = inlined_call_operand.vmem [shape: f32[16,128], index: 7, kind: output, shape index: {}]
  %s8 = sld [smem:[#allocation0]]
  $region50: #{mlp_forward.1} parent=0
    _
  %s10 = ssub.s32 1, %s8
  %s11 = scalar_select 0, %s10, %s8
  $region1: #{mlp_forward.1} parent=0
    #allocation2 [shape = 'u8[32768]{0}', space=vmem, size = 0x8000, scoped, tag = 'input window, operand 1, single buffered']
    #allocation3 [shape = 's32[1]{0}', space=sflag, size = 0x4, scoped, tag = 'scoped memory for mlp_forward.1']
    #allocation4 [shape = 'u8[32768]{0}', space=vmem, size = 0x8000, scoped, tag = 'input window, operand 3, single buffered']
    #allocation5 [shape = 's32[1]{0}', space=sflag, size = 0x4, scoped, tag = 'scoped memory for mlp_forward.1']
    #allocation6 [shape = 'u8[32768]{0}', space=vmem, size = 0x8000, scoped, tag = 'input window, operand 5, single buffered']
    %12 = vsyncpa [#allocation3], 0
    %13 = vsyncpa [#allocation5], 0
    // Predicated region
    $region2: #{mlp_forward.1} parent=1 // pred_check
      _
    $region3: #{mlp_forward.1} parent=1 // pred_check_branch
      %15 = sbr.rel (0) target = $region5
    $region4: #{mlp_forward.1} parent=1 // pred_region
      _
    $region5: #{mlp_forward.1} parent=1 // pred_fallthru
      _
    // Predicated region
    $region6: #{mlp_forward.1} parent=1 // pred_check
      _
    $region7: #{mlp_forward.1} parent=1 // pred_check_branch
      %17 = sbr.rel (0) target = $region9
    $region8: #{mlp_forward.1} parent=1 // pred_region
      %s19 = ssub.s32 1024, 1024
      %20 = vsyncadd [#allocation3], %s19
      %s21 = sshll.u32 [#allocation2], 4
      %s22 = int_to_ptr.vmem [resolvable:$true] %s21
      %27 = dma.hbm_to_vmem [thread:$0]  %s1, 1024, %s22, [#allocation3], 64, 64, 4
    $region9: #{mlp_forward.1} parent=1 // pred_fallthru
      _
    // Predicated region
    $region10: #{mlp_forward.1} parent=1 // pred_check
      _
    $region11: #{mlp_forward.1} parent=1 // pred_check_branch
      %29 = sbr.rel (0) target = $region13
    $region12: #{mlp_forward.1} parent=1 // pred_region
      _
    $region13: #{mlp_forward.1} parent=1 // pred_fallthru
      _
    // Predicated region
    $region14: #{mlp_forward.1} parent=1 // pred_check
      _
    $region15: #{mlp_forward.1} parent=1 // pred_check_branch
      %31 = sbr.rel (0) target = $region17
    $region16: #{mlp_forward.1} parent=1 // pred_region
      %s33 = ssub.s32 1024, 1024
      %34 = vsyncadd [#allocation5], %s33
      %s35 = sshll.u32 [#allocation4], 4
      %s36 = int_to_ptr.vmem [resolvable:$true] %s35
      %41 = dma.hbm_to_vmem [thread:$0]  %s3, 1024, %s36, [#allocation5], 64, 64, 4
    $region17: #{mlp_forward.1} parent=1 // pred_fallthru
      _
    // Predicated region
    $region18: #{mlp_forward.1} parent=1 // pred_check
      _
    $region19: #{mlp_forward.1} parent=1 // pred_check_branch
      %43 = sbr.rel (0) target = $region21
    $region20: #{mlp_forward.1} parent=1 // pred_region
      _
    $region21: #{mlp_forward.1} parent=1 // pred_fallthru
      _
    // Predicated region
    $region22: #{mlp_forward.1} parent=1 // pred_check
      _
    $region23: #{mlp_forward.1} parent=1 // pred_check_branch
      %45 = sbr.rel (0) target = $region25
    $region24: #{mlp_forward.1} parent=1 // pred_region
      %s47 = ssub.s32 1024, 1024
      %48 = vsyncadd [#allocation5], %s47
      %s49 = sshll.u32 [#allocation6], 4
      %s50 = int_to_ptr.vmem [resolvable:$true] %s49
      %55 = dma.hbm_to_vmem [thread:$0]  %s5, 1024, %s50, [#allocation5], 64, 64, 4
    $region25: #{mlp_forward.1} parent=1 // pred_fallthru
      _
    // Predicated region
    $region26: #{mlp_forward.1} parent=1 // pred_check
      _
    $region27: #{mlp_forward.1} parent=1 // pred_check_branch
      %57 = sbr.rel (0) target = $region29
    $region28: #{mlp_forward.1} parent=1 // pred_region
      _
    $region29: #{mlp_forward.1} parent=1 // pred_fallthru
      _
    // Predicated region
    $region30: #{mlp_forward.1} parent=1 // pred_check
      _
    $region31: #{mlp_forward.1} parent=1 // pred_check_branch
      %59 = sbr.rel (0) target = $region33
    $region32: #{mlp_forward.1} parent=1 // pred_region
      %60 = dma.done [#allocation3], 1024
    $region33: #{mlp_forward.1} parent=1 // pred_fallthru
      _
    // Predicated region
    $region34: #{mlp_forward.1} parent=1 // pred_check
      _
    $region35: #{mlp_forward.1} parent=1 // pred_check_branch
      %62 = sbr.rel (0) target = $region37
    $region36: #{mlp_forward.1} parent=1 // pred_region
      %63 = dma.done [#allocation5], 1024
    $region37: #{mlp_forward.1} parent=1 // pred_fallthru
      _
    // Predicated region
    $region38: #{mlp_forward.1} parent=1 // pred_check
      _
    $region39: #{mlp_forward.1} parent=1 // pred_check_branch
      %65 = sbr.rel (0) target = $region41
    $region40: #{mlp_forward.1} parent=1 // pred_region
      %66 = dma.done [#allocation5], 1024
    $region41: #{mlp_forward.1} parent=1 // pred_fallthru
      _
    %v68 = vld [vmem:[%s0] sm:$0xf]
    %v69 = vld [vmem:[%s0 + $0x4] sm:$0xf]
    %v70 = vld [vmem:[#allocation2] sm:$0xf]
    %v71 = vld [vmem:[#allocation2 + $0x4] sm:$0xf]
    %v72 = vld [vmem:[#allocation2 + $0x8] sm:$0xf]
    %v73 = vld [vmem:[#allocation2 + $0xc] sm:$0xf]
    %v74 = vld [vmem:[#allocation2 + $0x10] sm:$0xf]
    %v75 = vld [vmem:[#allocation2 + $0x14] sm:$0xf]
    %v76 = vld [vmem:[#allocation2 + $0x18] sm:$0xf]
    %v77 = vld [vmem:[#allocation2 + $0x1c] sm:$0xf]
    %v78 = vld [vmem:[#allocation2 + $0x20] sm:$0xf]
    %v79 = vld [vmem:[#allocation2 + $0x24] sm:$0xf]
    %v80 = vld [vmem:[#allocation2 + $0x28] sm:$0xf]
    %v81 = vld [vmem:[#allocation2 + $0x2c] sm:$0xf]
    %v82 = vld [vmem:[#allocation2 + $0x30] sm:$0xf]
    %v83 = vld [vmem:[#allocation2 + $0x34] sm:$0xf]
    %v84 = vld [vmem:[#allocation2 + $0x38] sm:$0xf]
    %v85 = vld [vmem:[#allocation2 + $0x3c] sm:$0xf]
    %v86 = vld [vmem:[%s2] sm:$0x1]
    %v88 = vlaneseq
    %v89 = vshrl.u32 %v88, 7
    %v90 = vsub.s32 0, %v89
    %v91 = vrot.slane %v86, %v90
    %v95 = vunpack.c.l.b16 %v68
    %v96 = vunpack.c.l.b16 %v69
    %v97 = vpack.c.b16 %v96, %v95
    %v115 = vunpack.c.l.b16 %v70
    %v116 = vunpack.c.l.b16 %v71
    %v117 = vunpack.c.l.b16 %v72
    %v118 = vunpack.c.l.b16 %v73
    %v119 = vunpack.c.l.b16 %v74
    %v120 = vunpack.c.l.b16 %v75
    %v121 = vunpack.c.l.b16 %v76
    %v122 = vunpack.c.l.b16 %v77
    %v123 = vunpack.c.l.b16 %v78
    %v124 = vunpack.c.l.b16 %v79
    %v125 = vunpack.c.l.b16 %v80
    %v126 = vunpack.c.l.b16 %v81
    %v127 = vunpack.c.l.b16 %v82
    %v128 = vunpack.c.l.b16 %v83
    %v129 = vunpack.c.l.b16 %v84
    %v130 = vunpack.c.l.b16 %v85
    %v131 = vpack.c.b16 %v116, %v115
    %v132 = vpack.c.b16 %v118, %v117
    %v133 = vpack.c.b16 %v120, %v119
    %v134 = vpack.c.b16 %v122, %v121
    %v135 = vpack.c.b16 %v124, %v123
    %v136 = vpack.c.b16 %v126, %v125
    %v137 = vpack.c.b16 %v128, %v127
    %v138 = vpack.c.b16 %v130, %v129
    %147 = vmatprep.subr.bf16.mxu0 0
    %148 = vmatpush1.bf16.msra.mxu0 %v138
    %149 = vmatprep.subr.bf16.mxu0 0
    %150 = vmatpush1.bf16.msra.mxu0 %v137
    %151 = vmatprep.subr.bf16.mxu0 0
    %152 = vmatpush1.bf16.msra.mxu0 %v136
    %153 = vmatprep.subr.bf16.mxu0 0
    %154 = vmatpush1.bf16.msra.mxu0 %v135
    %155 = vmatprep.subr.bf16.mxu0 0
    %156 = vmatpush1.bf16.msra.mxu0 %v134
    %157 = vmatprep.subr.bf16.mxu0 0
    %158 = vmatpush1.bf16.msra.mxu0 %v133
    %159 = vmatprep.subr.bf16.mxu0 0
    %160 = vmatpush1.bf16.msra.mxu0 %v132
    %161 = vmatprep.subr.bf16.mxu0 0
    %162 = vmatpush1.bf16.msra.mxu0 %v131
    %163 = vmatprep.subr.bf16.mxu0 0
    %164 = vmatpush2.bf16.msra.mxu0 0
    %165 = vmatprep.subr.bf16.mxu0 0
    %166 = vmatpush2.bf16.msra.mxu0 0
    %167 = vmatprep.subr.bf16.mxu0 0
    %168 = vmatpush2.bf16.msra.mxu0 0
    %169 = vmatprep.subr.bf16.mxu0 0
    %170 = vmatpush2.bf16.msra.mxu0 0
    %171 = vmatprep.subr.bf16.mxu0 0
    %172 = vmatpush2.bf16.msra.mxu0 0
    %173 = vmatprep.subr.bf16.mxu0 0
    %174 = vmatpush2.bf16.msra.mxu0 0
    %175 = vmatprep.subr.bf16.mxu0 0
    %176 = vmatpush2.bf16.msra.mxu0 0
    %177 = vmatprep.subr.bf16.mxu0 0
    %178 = vmatpush2.bf16.msra.mxu0 0
    %179 = vmatprep.mubr.bf16.mxu0 0
    %180 = vmatmul.mubr.bf16.gmra.mxu0 %v97
    %v181 = vpop.f32.mrf.mxu0
    %v182 = vadd.f32 %v91, %v181
    %v183 = vpop.f32.mrf.mxu0
    %v184 = vpop.f32.mrf.mxu0
    %v185 = vadd.f32 %v91, %v184
    %v186 = vpop.f32.mrf.mxu0
    %187 = vdwg.mxu0
    %v188 = vtanh.pop %v182
    %v189 = vtanh.pop %v185
    %v190 = vpack.c.bf16 %v189, %v188
    %v191 = vld [vmem:[#allocation4] sm:$0xf]
    %v192 = vld [vmem:[#allocation4 + $0x4] sm:$0xf]
    %v193 = vld [vmem:[#allocation4 + $0x8] sm:$0xf]
    %v194 = vld [vmem:[#allocation4 + $0xc] sm:$0xf]
    %v195 = vld [vmem:[#allocation4 + $0x10] sm:$0xf]
    %v196 = vld [vmem:[#allocation4 + $0x14] sm:$0xf]
    %v197 = vld [vmem:[#allocation4 + $0x18] sm:$0xf]
    %v198 = vld [vmem:[#allocation4 + $0x1c] sm:$0xf]
    %v199 = vld [vmem:[#allocation4 + $0x20] sm:$0xf]
    %v200 = vld [vmem:[#allocation4 + $0x24] sm:$0xf]
    %v201 = vld [vmem:[#allocation4 + $0x28] sm:$0xf]
    %v202 = vld [vmem:[#allocation4 + $0x2c] sm:$0xf]
    %v203 = vld [vmem:[#allocation4 + $0x30] sm:$0xf]
    %v204 = vld [vmem:[#allocation4 + $0x34] sm:$0xf]
    %v205 = vld [vmem:[#allocation4 + $0x38] sm:$0xf]
    %v206 = vld [vmem:[#allocation4 + $0x3c] sm:$0xf]
    %v207 = vld [vmem:[%s4] sm:$0x1]
    %v209 = vlaneseq
    %v210 = vshrl.u32 %v209, 7
    %v211 = vsub.s32 0, %v210
    %v212 = vrot.slane %v207, %v211
    %v230 = vunpack.c.l.b16 %v191
    %v231 = vunpack.c.l.b16 %v192
    %v232 = vunpack.c.l.b16 %v193
    %v233 = vunpack.c.l.b16 %v194
    %v234 = vunpack.c.l.b16 %v195
    %v235 = vunpack.c.l.b16 %v196
    %v236 = vunpack.c.l.b16 %v197
    %v237 = vunpack.c.l.b16 %v198
    %v238 = vunpack.c.l.b16 %v199
    %v239 = vunpack.c.l.b16 %v200
    %v240 = vunpack.c.l.b16 %v201
    %v241 = vunpack.c.l.b16 %v202
    %v242 = vunpack.c.l.b16 %v203
    %v243 = vunpack.c.l.b16 %v204
    %v244 = vunpack.c.l.b16 %v205
    %v245 = vunpack.c.l.b16 %v206
    %v246 = vpack.c.b16 %v231, %v230
    %v247 = vpack.c.b16 %v233, %v232
    %v248 = vpack.c.b16 %v235, %v234
    %v249 = vpack.c.b16 %v237, %v236
    %v250 = vpack.c.b16 %v239, %v238
    %v251 = vpack.c.b16 %v241, %v240
    %v252 = vpack.c.b16 %v243, %v242
    %v253 = vpack.c.b16 %v245, %v244
    %262 = vmatprep.subr.bf16.mxu0 0
    %263 = vmatpush1.bf16.msra.mxu0 %v253
    %264 = vmatprep.subr.bf16.mxu0 0
    %265 = vmatpush1.bf16.msra.mxu0 %v252
    %266 = vmatprep.subr.bf16.mxu0 0
    %267 = vmatpush1.bf16.msra.mxu0 %v251
    %268 = vmatprep.subr.bf16.mxu0 0
    %269 = vmatpush1.bf16.msra.mxu0 %v250
    %270 = vmatprep.subr.bf16.mxu0 0
    %271 = vmatpush1.bf16.msra.mxu0 %v249
    %272 = vmatprep.subr.bf16.mxu0 0
    %273 = vmatpush1.bf16.msra.mxu0 %v248
    %274 = vmatprep.subr.bf16.mxu0 0
    %275 = vmatpush1.bf16.msra.mxu0 %v247
    %276 = vmatprep.subr.bf16.mxu0 0
    %277 = vmatpush1.bf16.msra.mxu0 %v246
    %278 = vmatprep.subr.bf16.mxu0 0
    %279 = vmatpush2.bf16.msra.mxu0 0
    %280 = vmatprep.subr.bf16.mxu0 0
    %281 = vmatpush2.bf16.msra.mxu0 0
    %282 = vmatprep.subr.bf16.mxu0 0
    %283 = vmatpush2.bf16.msra.mxu0 0
    %284 = vmatprep.subr.bf16.mxu0 0
    %285 = vmatpush2.bf16.msra.mxu0 0
    %286 = vmatprep.subr.bf16.mxu0 0
    %287 = vmatpush2.bf16.msra.mxu0 0
    %288 = vmatprep.subr.bf16.mxu0 0
    %289 = vmatpush2.bf16.msra.mxu0 0
    %290 = vmatprep.subr.bf16.mxu0 0
    %291 = vmatpush2.bf16.msra.mxu0 0
    %292 = vmatprep.subr.bf16.mxu0 0
    %293 = vmatpush2.bf16.msra.mxu0 0
    %294 = vmatprep.mubr.bf16.mxu0 0
    %295 = vmatmul.mubr.bf16.gmra.mxu0 %v190
    %v296 = vpop.f32.mrf.mxu0
    %v297 = vadd.f32 %v212, %v296
    %v298 = vpop.f32.mrf.mxu0
    %v299 = vpop.f32.mrf.mxu0
    %v300 = vadd.f32 %v212, %v299
    %v301 = vpop.f32.mrf.mxu0
    %302 = vdwg.mxu0
    %v303 = vtanh.pop %v297
    %v304 = vtanh.pop %v300
    %v305 = vpack.c.bf16 %v304, %v303
    %v306 = vld [vmem:[#allocation6] sm:$0xf]
    %v307 = vld [vmem:[#allocation6 + $0x4] sm:$0xf]
    %v308 = vld [vmem:[#allocation6 + $0x8] sm:$0xf]
    %v309 = vld [vmem:[#allocation6 + $0xc] sm:$0xf]
    %v310 = vld [vmem:[#allocation6 + $0x10] sm:$0xf]
    %v311 = vld [vmem:[#allocation6 + $0x14] sm:$0xf]
    %v312 = vld [vmem:[#allocation6 + $0x18] sm:$0xf]
    %v313 = vld [vmem:[#allocation6 + $0x1c] sm:$0xf]
    %v314 = vld [vmem:[#allocation6 + $0x20] sm:$0xf]
    %v315 = vld [vmem:[#allocation6 + $0x24] sm:$0xf]
    %v316 = vld [vmem:[#allocation6 + $0x28] sm:$0xf]
    %v317 = vld [vmem:[#allocation6 + $0x2c] sm:$0xf]
    %v318 = vld [vmem:[#allocation6 + $0x30] sm:$0xf]
    %v319 = vld [vmem:[#allocation6 + $0x34] sm:$0xf]
    %v320 = vld [vmem:[#allocation6 + $0x38] sm:$0xf]
    %v321 = vld [vmem:[#allocation6 + $0x3c] sm:$0xf]
    %v322 = vld [vmem:[%s6] sm:$0x1]
    %v324 = vlaneseq
    %v325 = vshrl.u32 %v324, 7
    %v326 = vsub.s32 0, %v325
    %v327 = vrot.slane %v322, %v326
    %v345 = vunpack.c.l.b16 %v306
    %v346 = vunpack.c.l.b16 %v307
    %v347 = vunpack.c.l.b16 %v308
    %v348 = vunpack.c.l.b16 %v309
    %v349 = vunpack.c.l.b16 %v310
    %v350 = vunpack.c.l.b16 %v311
    %v351 = vunpack.c.l.b16 %v312
    %v352 = vunpack.c.l.b16 %v313
    %v353 = vunpack.c.l.b16 %v314
    %v354 = vunpack.c.l.b16 %v315
    %v355 = vunpack.c.l.b16 %v316
    %v356 = vunpack.c.l.b16 %v317
    %v357 = vunpack.c.l.b16 %v318
    %v358 = vunpack.c.l.b16 %v319
    %v359 = vunpack.c.l.b16 %v320
    %v360 = vunpack.c.l.b16 %v321
    %v361 = vpack.c.b16 %v346, %v345
    %v362 = vpack.c.b16 %v348, %v347
    %v363 = vpack.c.b16 %v350, %v349
    %v364 = vpack.c.b16 %v352, %v351
    %v365 = vpack.c.b16 %v354, %v353
    %v366 = vpack.c.b16 %v356, %v355
    %v367 = vpack.c.b16 %v358, %v357
    %v368 = vpack.c.b16 %v360, %v359
    %377 = vmatprep.subr.bf16.mxu0 0
    %378 = vmatpush1.bf16.msra.mxu0 %v368
    %379 = vmatprep.subr.bf16.mxu0 0
    %380 = vmatpush1.bf16.msra.mxu0 %v367
    %381 = vmatprep.subr.bf16.mxu0 0
    %382 = vmatpush1.bf16.msra.mxu0 %v366
    %383 = vmatprep.subr.bf16.mxu0 0
    %384 = vmatpush1.bf16.msra.mxu0 %v365
    %385 = vmatprep.subr.bf16.mxu0 0
    %386 = vmatpush1.bf16.msra.mxu0 %v364
    %387 = vmatprep.subr.bf16.mxu0 0
    %388 = vmatpush1.bf16.msra.mxu0 %v363
    %389 = vmatprep.subr.bf16.mxu0 0
    %390 = vmatpush1.bf16.msra.mxu0 %v362
    %391 = vmatprep.subr.bf16.mxu0 0
    %392 = vmatpush1.bf16.msra.mxu0 %v361
    %393 = vmatprep.subr.bf16.mxu0 0
    %394 = vmatpush2.bf16.msra.mxu0 0
    %395 = vmatprep.subr.bf16.mxu0 0
    %396 = vmatpush2.bf16.msra.mxu0 0
    %397 = vmatprep.subr.bf16.mxu0 0
    %398 = vmatpush2.bf16.msra.mxu0 0
    %399 = vmatprep.subr.bf16.mxu0 0
    %400 = vmatpush2.bf16.msra.mxu0 0
    %401 = vmatprep.subr.bf16.mxu0 0
    %402 = vmatpush2.bf16.msra.mxu0 0
    %403 = vmatprep.subr.bf16.mxu0 0
    %404 = vmatpush2.bf16.msra.mxu0 0
    %405 = vmatprep.subr.bf16.mxu0 0
    %406 = vmatpush2.bf16.msra.mxu0 0
    %407 = vmatprep.subr.bf16.mxu0 0
    %408 = vmatpush2.bf16.msra.mxu0 0
    %409 = vmatprep.mubr.bf16.mxu0 0
    %410 = vmatmul.mubr.bf16.gmra.mxu0 %v305
    %v411 = vpop.f32.mrf.mxu0
    %v412 = vadd.f32 %v327, %v411
    %v413 = vpop.f32.mrf.mxu0
    %v414 = vpop.f32.mrf.mxu0
    %v415 = vadd.f32 %v327, %v414
    %v416 = vpop.f32.mrf.mxu0
    %417 = vdwg.mxu0
    %418 = vst [vmem:[%s7] sm:$0xff] %v412
    %419 = vst [vmem:[%s7 + $0x8] sm:$0xff] %v415
    // Predicated region
    $region42: #{mlp_forward.1} parent=1 // pred_check
      _
    $region43: #{mlp_forward.1} parent=1 // pred_check_branch
      %421 = sbr.rel (0) target = $region45
    $region44: #{mlp_forward.1} parent=1 // pred_region
      _
    $region45: #{mlp_forward.1} parent=1 // pred_fallthru
      _
    // Predicated region
    $region46: #{mlp_forward.1} parent=1 // pred_check
      _
    $region47: #{mlp_forward.1} parent=1 // pred_check_branch
      %423 = sbr.rel (0) target = $region49
    $region48: #{mlp_forward.1} parent=1 // pred_region
      _
    $region49: #{mlp_forward.1} parent=1 // pred_fallthru
      _
    %424 = vsyncpa [#allocation3], 1
    %425 = vsyncpa [#allocation5], 1

</llo_original>
